<compile_context>
chip_gen: v7x
topology: tpu7x:2x2x1
jax: 0.10.0
libtpu: 0.0.40
codegen_flags: <defaults>
</compile_context>

<pallas_src>
import jax
import jax.numpy as jnp
from jax.experimental import pallas as pl
from jax.experimental.pallas import tpu as pltpu

_LANE = 512           # lane-dense last dim (multiple of 128 -> unmasked vst)
_MAX_TILE_ROWS = 512  # 512x512 f32 tile = 1 MiB; 2 in-bufs + 2 out-bufs = 4 MiB


def _copy_kernel(x_ref, o_ref):
    # Pure device-copy: this is the entire forward pass of ItemNet.
    o_ref[...] = x_ref[...]


def _fused_copy(fused):
    """Row-tiled, lane-dense HBM->VMEM->HBM copy of a (rows, _LANE) slab."""
    rows, lane = fused.shape
    tile_rows = min(_MAX_TILE_ROWS, rows)
    grid = rows // tile_rows  # wrapper guarantees rows % tile_rows == 0
    nbytes = fused.size * fused.dtype.itemsize
    return pl.pallas_call(
        _copy_kernel,
        out_shape=jax.ShapeDtypeStruct(fused.shape, fused.dtype),
        grid_spec=pl.GridSpec(
            grid=(grid,),
            in_specs=[pl.BlockSpec((tile_rows, lane), lambda i: (i, 0))],
            out_specs=pl.BlockSpec((tile_rows, lane), lambda i: (i, 0)),
        ),
        compiler_params=pltpu.CompilerParams(
            dimension_semantics=("parallel",),
        ),
        cost_estimate=pl.CostEstimate(
            flops=0, transcendentals=0, bytes_accessed=2 * nbytes),
        input_output_aliases={0: 0},
    )(fused)


def itemnet_forward(a, b):
    """Pallas equivalent of ItemNet.forward(device): returns (a, b) after an
    explicit, bandwidth-optimal trip through the TPU memory hierarchy."""
    assert a.dtype == b.dtype, "fused copy path expects matching dtypes"

    # Fuse both tensors into one lane-dense slab, padded so the row count is a
    # multiple of 8 (sublane) and of the row tile (so the grid divides evenly).
    total = a.size + b.size
    rows = pl.cdiv(total, _LANE)
    rows = 8 * pl.cdiv(rows, 8)
    tile_rows = min(_MAX_TILE_ROWS, rows)
    rows = tile_rows * pl.cdiv(rows, tile_rows)

    flat = jnp.concatenate([a.reshape(-1), b.reshape(-1)])
    pad = rows * _LANE - total
    if pad:
        flat = jnp.concatenate([flat, jnp.zeros((pad,), dtype=flat.dtype)])
    fused = flat.reshape(rows, _LANE)

    out_flat = _fused_copy(fused).reshape(-1)
    a_out = out_flat[:a.size].reshape(a.shape)
    b_out = out_flat[a.size:a.size + b.size].reshape(b.shape)
    return a_out, b_out


if __name__ == "__main__":
    key = jax.random.PRNGKey(0)
    ka, kb = jax.random.split(key)

    # Small synthetic stand-ins for the CSV-loaded tensors (float32 matrices).
    a = jax.random.normal(ka, (16, 32), dtype=jnp.float32)
    b = jax.random.normal(kb, (8, 64), dtype=jnp.float32)

    fwd = jax.jit(itemnet_forward)
    a_out, b_out = fwd(a, b)
    jax.block_until_ready((a_out, b_out))

    # Forward must be an exact identity on both tensors.
    assert jnp.array_equal(a_out, a)
    assert jnp.array_equal(b_out, b)

    print("KERNEL_OK")
</pallas_src>

<mosaic_0001>
module attributes {stable_mosaic.version = 11 : i64} {
  func.func @_copy_kernel(%arg0: i32, %arg1: memref<8x512xf32, #tpu.memory_space<vmem>>, %arg2: memref<8x512xf32, #tpu.memory_space<vmem>>) attributes {dimension_semantics = [#tpu.dimension_semantics<parallel>], iteration_bounds = array<i64: 1>, scalar_prefetch = 0 : i64, scratch_operands = 0 : i64, tpu.core_type = #tpu.core_type<tc>, window_params = [{transform_indices = @transform_0, window_bounds = array<i64: 8, 512>}, {transform_indices = @transform_1, window_bounds = array<i64: 8, 512>}]} {
    %c0 = arith.constant 0 : index
    %c0_0 = arith.constant 0 : index
    %0 = vector.load %arg1[%c0, %c0_0] : memref<8x512xf32, #tpu.memory_space<vmem>>, vector<8x512xf32>
    %c0_1 = arith.constant 0 : index
    %c0_2 = arith.constant 0 : index
    %1 = vector.load %arg2[%c0_1, %c0_2] : memref<8x512xf32, #tpu.memory_space<vmem>>, vector<8x512xf32>
    tpu.vector_store %arg2[%c0_1, %c0_2], %0 {strides = array<i32>} : memref<8x512xf32, #tpu.memory_space<vmem>>, vector<8x512xf32>,
    return
  }
  func.func @transform_0(%arg0: i32) -> (i32, i32) {
    %c0_i32 = arith.constant 0 : i32
    %c0_i32_0 = arith.constant 0 : i32
    return %arg0, %c0_i32 : i32, i32
  }
  func.func @transform_1(%arg0: i32) -> (i32, i32) {
    %c0_i32 = arith.constant 0 : i32
    %c0_i32_0 = arith.constant 0 : i32
    return %arg0, %c0_i32 : i32, i32
  }
}

</mosaic_0001>

<llo_original>
// kernel: itemnet_forward.1
$region0: #{itemnet_forward.1}
  #allocation0 [shape = 'u32[]', space=smem, size = 0x4, offset = 0x4, fixed_abs, tag = 'smem constant byte address 0x4 - core index']
  #allocation1 [shape = 'u32[144,128]{1,0:T(1,128)}', space=vmem, size = 0x12000, scoped, tag = 'internal scratch']
  %s0 = inlined_call_operand.vmem [shape: f32[8,512], index: 0, kind: input, shape index: {}, may-alias: {0,1}]
  %s1 = inlined_call_operand.vmem [shape: f32[8,512], index: 1, kind: output, shape index: {}, may-alias: {0,1}]
  %s2 = sld [smem:[#allocation0]]
  $region14: #{itemnet_forward.1} parent=0
    _
  %s4 = ssub.s32 1, %s2
  %s5 = scalar_select 0, %s4, %s2
  // Predicated region
  $region2: #{itemnet_forward.1} parent=0 // pred_check
    _
  $region3: #{itemnet_forward.1} parent=0 // pred_check_branch
    %7 = sbr.rel (0) target = $region5
  $region4: #{itemnet_forward.1} parent=0 // pred_region
    _
  $region5: #{itemnet_forward.1} parent=0 // pred_fallthru
    _
  %v8 = vld [vmem:[%s0] sm:$0xff]
  %v9 = vld [vmem:[%s0 + $0x8] sm:$0xff]
  %v10 = vld [vmem:[%s0 + $0x10] sm:$0xff]
  %v11 = vld [vmem:[%s0 + $0x18] sm:$0xff]
  %12 = vst [vmem:[%s1] sm:$0xff] %v8
  %13 = vst [vmem:[%s1 + $0x8] sm:$0xff] %v9
  %14 = vst [vmem:[%s1 + $0x10] sm:$0xff] %v10
  %15 = vst [vmem:[%s1 + $0x18] sm:$0xff] %v11
  // Predicated region
  $region6: #{itemnet_forward.1} parent=0 // pred_check
    _
  $region7: #{itemnet_forward.1} parent=0 // pred_check_branch
    %17 = sbr.rel (0) target = $region9
  $region8: #{itemnet_forward.1} parent=0 // pred_region
    _
  $region9: #{itemnet_forward.1} parent=0 // pred_fallthru
    _
  // Predicated region
  $region10: #{itemnet_forward.1} parent=0 // pred_check
    _
  $region11: #{itemnet_forward.1} parent=0 // pred_check_branch
    %19 = sbr.rel (0) target = $region13
  $region12: #{itemnet_forward.1} parent=0 // pred_region
    _
  $region13: #{itemnet_forward.1} parent=0 // pred_fallthru
    _

</llo_original>
